<compile_context>
chip_gen: v7x
topology: tpu7x:2x2x1
jax: 0.10.0
libtpu: 0.0.40
codegen_flags: <defaults>
</compile_context>

<pallas_src>
import functools

import jax
import jax.numpy as jnp
from jax.experimental import pallas as pl
from jax.experimental.pallas import tpu as pltpu

EPS = 1e-5                        # PyTorch BatchNorm1d default
_VMEM_BUDGET = 24 * 1024 * 1024   # planning budget (headroom under the 32 MiB limit below)
_VMEM_LIMIT = 32 * 1024 * 1024    # explicit scoped-VMEM limit; safe on v5e/v6e/v7x


def _fixed_bytes(i, o):
    # resident weight (I,O) + stacked gamma/beta (2,O) + four (1,O) f32 stat/fold scratches
    return 4 * (i * o + 2 * o + 4 * o)


def _plan_rows(n, i, o):
    """Pick a batch-row tile.  Returns n (=> grid-less single invocation) if the whole
    problem fits the VMEM budget; otherwise the largest multiple of 8 whose streamed,
    double-buffered x/out tiles fit next to the resident weight."""
    per_row_resident = 4 * (i + 2 * o)            # x row + f32 h row + out row, resident once
    if _fixed_bytes(i, o) + n * per_row_resident <= _VMEM_BUDGET:
        return n
    per_row_stream = 2 * 4 * (i + o)              # double-buffered x row + out row
    cap = (_VMEM_BUDGET - _fixed_bytes(i, o)) // per_row_stream
    return max(8, min((cap // 8) * 8, 2048))


# --------------------------------------------------------------------------------------
# Fast path: whole batch in one grid-less invocation (matmul runs exactly once).
# --------------------------------------------------------------------------------------
def _residual_single_kernel(x_ref, w_ref, gb_ref, out_ref, *, batch_n, matmul_dtype):
    x = x_ref[...].astype(matmul_dtype)
    w = w_ref[...].astype(matmul_dtype)
    h = jnp.dot(x, w, preferred_element_type=jnp.float32)          # (N, O) f32, bias-free

    inv_n = 1.0 / batch_n
    mean = jnp.sum(h, axis=0, keepdims=True) * inv_n
    var = jnp.maximum(jnp.sum(h * h, axis=0, keepdims=True) * inv_n - mean * mean, 0.0)

    gb = gb_ref[...]                                                # (2, O): [gamma; beta]
    scale = gb[0:1, :] * jax.lax.rsqrt(var + EPS)
    shift = gb[1:2, :] - mean * scale
    out_ref[...] = jnp.maximum(h * scale + shift, 0.0)


def _single_call(x, w_io, gamma_beta, *, matmul_dtype):
    n, _ = x.shape
    o = w_io.shape[1]
    kernel = functools.partial(_residual_single_kernel, batch_n=float(n),
                               matmul_dtype=matmul_dtype)
    return pl.pallas_call(
        kernel,
        out_shape=jax.ShapeDtypeStruct((n, o), jnp.float32),
        compiler_params=pltpu.CompilerParams(vmem_limit_bytes=_VMEM_LIMIT),
    )(x, w_io, gamma_beta)


# --------------------------------------------------------------------------------------
# Large-batch path: two-phase grid with GLOBAL batch stats; h cached in VMEM when it fits.
# --------------------------------------------------------------------------------------
def _residual_tiled_kernel(x_ref, w_ref, gb_ref, out_ref,
                           h_ref, sum_ref, sumsq_ref, scale_ref, shift_ref,
                           *, batch_n, cache_h, matmul_dtype):
    phase = pl.program_id(0)      # 0: accumulate global batch stats, 1: normalize + write
    tile = pl.program_id(1)       # batch tile

    def _matmul():
        x = x_ref[...].astype(matmul_dtype)
        w = w_ref[...].astype(matmul_dtype)
        return jnp.dot(x, w, preferred_element_type=jnp.float32)   # (TN, O) f32, bias-free

    @pl.when((phase == 0) & (tile == 0))
    def _init_stats():
        sum_ref[...] = jnp.zeros_like(sum_ref)
        sumsq_ref[...] = jnp.zeros_like(sumsq_ref)

    @pl.when(phase == 0)
    def _accumulate():
        h = _matmul()
        sum_ref[...] += jnp.sum(h, axis=0, keepdims=True)
        sumsq_ref[...] += jnp.sum(h * h, axis=0, keepdims=True)
        if cache_h:                                   # keep h so phase 1 skips the matmul
            h_ref[tile] = h

    @pl.when((phase == 1) & (tile == 0))
    def _fold():
        inv_n = 1.0 / batch_n
        mean = sum_ref[...] * inv_n
        var = jnp.maximum(sumsq_ref[...] * inv_n - mean * mean, 0.0)
        gb = gb_ref[...]                              # (2, O): [gamma; beta]
        scale = gb[0:1, :] * jax.lax.rsqrt(var + EPS)
        scale_ref[...] = scale
        shift_ref[...] = gb[1:2, :] - mean * scale

    @pl.when(phase == 1)
    def _write():
        h = h_ref[tile] if cache_h else _matmul()
        out_ref[...] = jnp.maximum(h * scale_ref[...] + shift_ref[...], 0.0)


def _tiled_call(x_pad, w_io, gamma_beta, *, true_n, tn, matmul_dtype, cache_h=None):
    n_pad, i = x_pad.shape
    o = w_io.shape[1]
    n_tiles = n_pad // tn

    if cache_h is None:
        per_row_stream = 2 * 4 * (i + o)
        cache_h = (_fixed_bytes(i, o) + 4 * n_pad * o + per_row_stream * tn) <= _VMEM_BUDGET

    kernel = functools.partial(_residual_tiled_kernel, batch_n=float(true_n),
                               cache_h=cache_h, matmul_dtype=matmul_dtype)

    # With the h-cache, x is only needed in phase 0 -> pin its block during phase 1 so no
    # new x DMAs are issued while writing the output.
    x_index = (lambda p, t: (t * (1 - p), 0)) if cache_h else (lambda p, t: (t, 0))

    return pl.pallas_call(
        kernel,
        out_shape=jax.ShapeDtypeStruct((n_pad, o), jnp.float32),
        grid=(2, n_tiles),                                    # (phase, batch tile)
        in_specs=[
            pl.BlockSpec((tn, i), x_index),                   # x tile
            pl.BlockSpec((i, o), lambda p, t: (0, 0)),        # weight: resident across grid
            pl.BlockSpec((2, o), lambda p, t: (0, 0)),        # [gamma; beta]: resident
        ],
        # Phase 0 pins the output block index to 0 and never writes it, so each output block
        # is flushed exactly once (after phase 1 fills it) with full-width stores.
        out_specs=pl.BlockSpec((tn, o), lambda p, t: (t * p, 0)),
        scratch_shapes=[
            pltpu.VMEM((n_tiles if cache_h else 1, tn, o), jnp.float32),  # cached h tiles
            pltpu.VMEM((1, o), jnp.float32),   # per-feature sum
            pltpu.VMEM((1, o), jnp.float32),   # per-feature sum of squares
            pltpu.VMEM((1, o), jnp.float32),   # folded scale = gamma * rsqrt(var + eps)
            pltpu.VMEM((1, o), jnp.float32),   # folded shift = beta - mean * scale
        ],
        compiler_params=pltpu.CompilerParams(
            # Phase 0 is a serial reduction over batch tiles and phase 1 must follow it.
            dimension_semantics=("arbitrary", "arbitrary"),
            vmem_limit_bytes=_VMEM_LIMIT,
        ),
    )(x_pad, w_io, gamma_beta)


# --------------------------------------------------------------------------------------
# Public wrapper
# --------------------------------------------------------------------------------------
def residual_forward(x, w_io, gamma_beta, *, matmul_dtype=jnp.float32,
                     row_tile=None, cache_h=None):
    """x: (N, I) f32; w_io: (I, O) f32 (fc weight transposed once at init time);
    gamma_beta: (2, O) f32 stacked BN affine params.  Returns (N, O + I)."""
    n, i = x.shape
    o = w_io.shape[1]
    tn = row_tile if row_tile is not None else _plan_rows(n, i, o)

    if tn >= n:
        bn_relu = _single_call(x, w_io, gamma_beta, matmul_dtype=matmul_dtype)
    else:
        tn = max(8, (tn // 8) * 8)
        n_pad = -(-n // tn) * tn
        # Zero padding is exact: the Linear is bias-free, so padded rows contribute exactly
        # zero to the batch sum / sum-of-squares; batch_n inside the kernel stays the true N.
        x_pad = x if n_pad == n else jnp.pad(x, ((0, n_pad - n), (0, 0)))
        bn_relu = _tiled_call(x_pad, w_io, gamma_beta, true_n=n, tn=tn,
                              matmul_dtype=matmul_dtype, cache_h=cache_h)
        if n_pad != n:
            bn_relu = bn_relu[:n]

    # torch.cat([out, input], dim=1): x pass-through stays in the wrapper.
    return jnp.concatenate([bn_relu, x], axis=1)


def residual_reference(x, w, b, gamma, beta):
    """Pure-JAX reference matching the PyTorch training-mode forward (WITH the Linear bias)."""
    h = x @ w.T + b
    mean = jnp.mean(h, axis=0, keepdims=True)
    var = jnp.mean((h - mean) ** 2, axis=0, keepdims=True)
    hn = (h - mean) / jnp.sqrt(var + EPS) * gamma + beta
    out = jnp.maximum(hn, 0.0)
    return jnp.concatenate([out, x], axis=1)


if __name__ == "__main__":
    key = jax.random.PRNGKey(0)
    N, I, O = 8, 32, 64    # small shapes consistent with Residual(i=32, o=64)

    k_x, k_w, k_b, k_g, k_be = jax.random.split(key, 5)
    x = jax.random.normal(k_x, (N, I), dtype=jnp.float32)

    # PyTorch Linear default init: U(-1/sqrt(I), 1/sqrt(I)).
    bound = 1.0 / jnp.sqrt(jnp.float32(I))
    w = jax.random.uniform(k_w, (O, I), jnp.float32, -bound, bound)
    b = jax.random.uniform(k_b, (O,), jnp.float32, -bound, bound)
    # Non-trivial BN affine params to exercise the scale/shift fold.
    gamma = jax.random.uniform(k_g, (O,), jnp.float32, 0.5, 1.5)
    beta = 0.1 * jax.random.normal(k_be, (O,), dtype=jnp.float32)

    # One-time parameter prep (NOT per-forward): transpose fc weight to (I, O), stack
    # gamma/beta.  The Linear bias is dropped -- training-mode BN cancels it exactly.
    w_io = jnp.transpose(w)                         # (I, O)
    gamma_beta = jnp.stack([gamma, beta], axis=0)   # (2, O)

    # Fast path (whole batch, single invocation).
    out = residual_forward(x, w_io, gamma_beta)
    jax.block_until_ready(out)
    ref = residual_reference(x, w, b, gamma, beta)
    assert out.shape == (N, O + I), out.shape
    assert jnp.allclose(out, ref, atol=1e-4, rtol=1e-4), "single-path mismatch vs reference"

    # Tiled two-phase path: global batch stats across tiles + batch padding (N=34 -> 40),
    # exercised both with the VMEM h-cache and with the matmul-recompute fallback.
    N2 = 34
    k_x2, _ = jax.random.split(k_x)
    x2 = jax.random.normal(k_x2, (N2, I), dtype=jnp.float32)
    ref2 = residual_reference(x2, w, b, gamma, beta)
    for cache in (True, False):
        out2 = residual_forward(x2, w_io, gamma_beta, row_tile=8, cache_h=cache)
        jax.block_until_ready(out2)
        assert out2.shape == (N2, O + I), out2.shape
        assert jnp.allclose(out2, ref2, atol=1e-4, rtol=1e-4), \
            f"tiled-path mismatch vs reference (cache_h={cache})"

    print("KERNEL_OK")
</pallas_src>

<mosaic_0001>
module attributes {stable_mosaic.version = 11 : i64} {
  func.func @_residual_single_kernel(%arg0: memref<8x32xf32, #tpu.memory_space<vmem>>, %arg1: memref<32x64xf32, #tpu.memory_space<vmem>>, %arg2: memref<2x64xf32, #tpu.memory_space<vmem>>, %arg3: memref<8x64xf32, #tpu.memory_space<vmem>>) attributes {dimension_semantics = [], scalar_prefetch = 0 : i64, scratch_operands = 0 : i64, tpu.core_type = #tpu.core_type<tc>} {
    %c0 = arith.constant 0 : index
    %c0_0 = arith.constant 0 : index
    %0 = vector.load %arg0[%c0, %c0_0] : memref<8x32xf32, #tpu.memory_space<vmem>>, vector<8x32xf32>
    %c0_1 = arith.constant 0 : index
    %c0_2 = arith.constant 0 : index
    %1 = vector.load %arg1[%c0_1, %c0_2] : memref<32x64xf32, #tpu.memory_space<vmem>>, vector<32x64xf32>
    %cst = arith.constant dense<0.000000e+00> : vector<8x64xf32>
    %2 = tpu.matmul %0, %1, %cst {dimension_numbers = #tpu.dot_dimension_numbers<[1], [0], [0], [1], [0, 0, 1, 1], [], []>} : vector<8x32xf32>, vector<32x64xf32>, vector<8x64xf32> -> vector<8x64xf32>
    %cst_3 = arith.constant dense<0.000000e+00> : vector<64xf32>
    %3 = vector.multi_reduction <add>, %2, %cst_3 [0] : vector<8x64xf32> to vector<64xf32>
    %4 = vector.shape_cast %3 : vector<64xf32> to vector<1x64xf32>
    %cst_4 = arith.constant 1.250000e-01 : f32
    %5 = vector.broadcast %cst_4 : f32 to vector<1x64xf32>
    %6 = arith.mulf %4, %5 : vector<1x64xf32>
    %7 = arith.mulf %2, %2 : vector<8x64xf32>
    %cst_5 = arith.constant dense<0.000000e+00> : vector<64xf32>
    %8 = vector.multi_reduction <add>, %7, %cst_5 [0] : vector<8x64xf32> to vector<64xf32>
    %9 = vector.shape_cast %8 : vector<64xf32> to vector<1x64xf32>
    %cst_6 = arith.constant 1.250000e-01 : f32
    %10 = vector.broadcast %cst_6 : f32 to vector<1x64xf32>
    %11 = arith.mulf %9, %10 : vector<1x64xf32>
    %12 = arith.mulf %6, %6 : vector<1x64xf32>
    %13 = arith.subf %11, %12 : vector<1x64xf32>
    %cst_7 = arith.constant 0.000000e+00 : f32
    %14 = vector.broadcast %cst_7 : f32 to vector<1x64xf32>
    %15 = arith.maximumf %13, %14 : vector<1x64xf32>
    %c0_8 = arith.constant 0 : index
    %c0_9 = arith.constant 0 : index
    %16 = vector.load %arg2[%c0_8, %c0_9] : memref<2x64xf32, #tpu.memory_space<vmem>>, vector<2x64xf32>
    %17 = vector.extract_strided_slice %16 {offsets = [0, 0], sizes = [1, 64], strides = [1, 1]} : vector<2x64xf32> to vector<1x64xf32>
    %cst_10 = arith.constant 9.99999974E-6 : f32
    %18 = vector.broadcast %cst_10 : f32 to vector<1x64xf32>
    %19 = arith.addf %15, %18 : vector<1x64xf32>
    %20 = math.rsqrt %19 : vector<1x64xf32>
    %21 = arith.mulf %17, %20 : vector<1x64xf32>
    %22 = vector.extract_strided_slice %16 {offsets = [1, 0], sizes = [1, 64], strides = [1, 1]} : vector<2x64xf32> to vector<1x64xf32>
    %23 = arith.mulf %6, %21 : vector<1x64xf32>
    %24 = arith.subf %22, %23 : vector<1x64xf32>
    %25 = vector.broadcast %21 : vector<1x64xf32> to vector<8x64xf32>
    %26 = arith.mulf %2, %25 : vector<8x64xf32>
    %27 = vector.broadcast %24 : vector<1x64xf32> to vector<8x64xf32>
    %28 = arith.addf %26, %27 : vector<8x64xf32>
    %cst_11 = arith.constant 0.000000e+00 : f32
    %29 = vector.broadcast %cst_11 : f32 to vector<8x64xf32>
    %30 = arith.maximumf %28, %29 : vector<8x64xf32>
    %c0_12 = arith.constant 0 : index
    %c0_13 = arith.constant 0 : index
    %31 = vector.load %arg3[%c0_12, %c0_13] : memref<8x64xf32, #tpu.memory_space<vmem>>, vector<8x64xf32>
    tpu.vector_store %arg3[%c0_12, %c0_13], %30 {strides = array<i32>} : memref<8x64xf32, #tpu.memory_space<vmem>>, vector<8x64xf32>,
    return
  }
}

</mosaic_0001>

<llo_original>
// kernel: tpu_custom_call.1
$region0: #{tpu_custom_call.1}
  #allocation0 [shape = 'u32[]', space=smem, size = 0x4, offset = 0x4, fixed_abs, tag = 'smem constant byte address 0x4 - core index']
  #allocation1 [shape = 'u32[144,128]{1,0:T(1,128)}', space=vmem, size = 0x12000, scoped, tag = 'internal scratch']
  %s0 = inlined_call_operand.hbm [shape: f32[8,32], index: 0, kind: input, shape index: {}]
  %s1 = inlined_call_operand.hbm [shape: f32[32,64], index: 1, kind: input, shape index: {}]
  %s2 = inlined_call_operand.vmem [shape: f32[2,64], index: 2, kind: input, shape index: {}]
  %s3 = inlined_call_operand.hbm [shape: f32[8,64], index: 3, kind: output, shape index: {}]
  %s4 = sld [smem:[#allocation0]]
  $region30: #{tpu_custom_call.1} parent=0
    _
  %s6 = ssub.s32 1, %s4
  %s7 = scalar_select 0, %s6, %s4
  $region1: #{tpu_custom_call.1} parent=0
    #allocation2 [shape = 'u8[4096]{0}', space=vmem, size = 0x1000, scoped, tag = 'input window, operand 0, single buffered']
    #allocation3 [shape = 's32[1]{0}', space=sflag, size = 0x4, scoped, tag = 'scoped memory for tpu_custom_call.1']
    #allocation4 [shape = 's32[1]{0}', space=sflag, size = 0x4, scoped, tag = 'scoped memory for tpu_custom_call.1']
    #allocation5 [shape = 'u8[16384]{0}', space=vmem, size = 0x4000, scoped, tag = 'input window, operand 1, single buffered']
    #allocation6 [shape = 's32[1]{0}', space=sflag, size = 0x4, scoped, tag = 'scoped memory for tpu_custom_call.1']
    #allocation7 [shape = 'u8[4096]{0}', space=vmem, size = 0x1000, scoped, tag = 'output window, operand 0, single buffered']
    %8 = vsyncpa [#allocation3], 0
    %9 = vsyncpa [#allocation6], 0
    %10 = vsyncpa [#allocation4], 0
    // Predicated region
    $region2: #{tpu_custom_call.1} parent=1 // pred_check
      _
    $region3: #{tpu_custom_call.1} parent=1 // pred_check_branch
      %12 = sbr.rel (0) target = $region5
    $region4: #{tpu_custom_call.1} parent=1 // pred_region
      %s14 = ssub.s32 128, 128
      %15 = vsyncadd [#allocation3], %s14
      %s17 = sshll.u32 [#allocation2], 4
      %s18 = int_to_ptr.vmem [resolvable:$true] %s17
      %20 = dma.hbm_to_vmem [thread:$0]  %s0, 128, %s18, [#allocation3]
    $region5: #{tpu_custom_call.1} parent=1 // pred_fallthru
      _
    // Predicated region
    $region6: #{tpu_custom_call.1} parent=1 // pred_check
      _
    $region7: #{tpu_custom_call.1} parent=1 // pred_check_branch
      %22 = sbr.rel (0) target = $region9
    $region8: #{tpu_custom_call.1} parent=1 // pred_region
      %s24 = ssub.s32 512, 512
      %25 = vsyncadd [#allocation6], %s24
      %s26 = sshll.u32 [#allocation5], 4
      %s27 = int_to_ptr.vmem [resolvable:$true] %s26
      %32 = dma.hbm_to_vmem [thread:$0]  %s1, 512, %s27, [#allocation6], 128, 128, 8
    $region9: #{tpu_custom_call.1} parent=1 // pred_fallthru
      _
    // Predicated region
    $region10: #{tpu_custom_call.1} parent=1 // pred_check
      _
    $region11: #{tpu_custom_call.1} parent=1 // pred_check_branch
      %34 = sbr.rel (0) target = $region13
    $region12: #{tpu_custom_call.1} parent=1 // pred_region
      _
    $region13: #{tpu_custom_call.1} parent=1 // pred_fallthru
      _
    // Predicated region
    $region14: #{tpu_custom_call.1} parent=1 // pred_check
      _
    $region15: #{tpu_custom_call.1} parent=1 // pred_check_branch
      %36 = sbr.rel (0) target = $region17
    $region16: #{tpu_custom_call.1} parent=1 // pred_region
      %37 = dma.done [#allocation3], 128
    $region17: #{tpu_custom_call.1} parent=1 // pred_fallthru
      _
    // Predicated region
    $region18: #{tpu_custom_call.1} parent=1 // pred_check
      _
    $region19: #{tpu_custom_call.1} parent=1 // pred_check_branch
      %39 = sbr.rel (0) target = $region21
    $region20: #{tpu_custom_call.1} parent=1 // pred_region
      %40 = dma.done [#allocation6], 512
    $region21: #{tpu_custom_call.1} parent=1 // pred_fallthru
      _
    %v41 = vld [vmem:[#allocation2] sm:$0xff]
    %v42 = vld [vmem:[#allocation5] sm:$0xff]
    %v43 = vld [vmem:[#allocation5 + $0x8] sm:$0xff]
    %v44 = vld [vmem:[#allocation5 + $0x10] sm:$0xff]
    %v45 = vld [vmem:[#allocation5 + $0x18] sm:$0xff]
    %vm46 = vcmask 261120
    %v48 = vsel %vm46, %v41, 0
    %50 = vmatprep.subr.mxu0 0.0
    %51 = vmatpush1.msra.mxu0 %v42
    %52 = vmatprep.subr.mxu0 0.0
    %53 = vmatpush1.msra.mxu0 %v43
    %54 = vmatprep.subr.mxu0 0.0
    %55 = vmatpush1.msra.mxu0 %v44
    %56 = vmatprep.subr.mxu0 0.0
    %57 = vmatpush1.msra.mxu0 %v45
    %58 = vmatprep.subr.mxu0 0.0
    %59 = vmatpush1.msra.mxu0 0.0
    %60 = vmatprep.subr.mxu0 0.0
    %61 = vmatpush1.msra.mxu0 0.0
    %62 = vmatprep.subr.mxu0 0.0
    %63 = vmatpush1.msra.mxu0 0.0
    %64 = vmatprep.subr.mxu0 0.0
    %65 = vmatpush1.msra.mxu0 0.0
    %66 = vmatprep.subr.mxu0 0.0
    %67 = vmatpush1.msra.mxu0 0.0
    %68 = vmatprep.subr.mxu0 0.0
    %69 = vmatpush1.msra.mxu0 0.0
    %70 = vmatprep.subr.mxu0 0.0
    %71 = vmatpush1.msra.mxu0 0.0
    %72 = vmatprep.subr.mxu0 0.0
    %73 = vmatpush1.msra.mxu0 0.0
    %74 = vmatprep.subr.mxu0 0.0
    %75 = vmatpush1.msra.mxu0 0.0
    %76 = vmatprep.subr.mxu0 0.0
    %77 = vmatpush1.msra.mxu0 0.0
    %78 = vmatprep.subr.mxu0 0.0
    %79 = vmatpush1.msra.mxu0 0.0
    %80 = vmatprep.subr.mxu0 0.0
    %81 = vmatpush1.msra.mxu0 0.0
    %82 = vmatprep.subr.mxu0 0.0
    %83 = vmatpush1.msra.mxu0 0.0
    %84 = vmatprep.subr.mxu0 0.0
    %85 = vmatpush1.msra.mxu0 0.0
    %86 = vmatprep.subr.mxu0 0.0
    %87 = vmatpush1.msra.mxu0 0.0
    %88 = vmatprep.subr.mxu0 0.0
    %89 = vmatpush1.msra.mxu0 0.0
    %90 = vmatprep.subr.mxu0 0.0
    %91 = vmatpush1.msra.mxu0 0.0
    %92 = vmatprep.subr.mxu0 0.0
    %93 = vmatpush1.msra.mxu0 0.0
    %94 = vmatprep.subr.mxu0 0.0
    %95 = vmatpush1.msra.mxu0 0.0
    %96 = vmatprep.subr.mxu0 0.0
    %97 = vmatpush1.msra.mxu0 0.0
    %98 = vmatprep.subr.mxu0 0.0
    %99 = vmatpush1.msra.mxu0 0.0
    %100 = vmatprep.subr.mxu0 0.0
    %101 = vmatpush1.msra.mxu0 0.0
    %102 = vmatprep.subr.mxu0 0.0
    %103 = vmatpush1.msra.mxu0 0.0
    %104 = vmatprep.subr.mxu0 0.0
    %105 = vmatpush1.msra.mxu0 0.0
    %106 = vmatprep.subr.mxu0 0.0
    %107 = vmatpush1.msra.mxu0 0.0
    %108 = vmatprep.subr.mxu0 0.0
    %109 = vmatpush1.msra.mxu0 0.0
    %110 = vmatprep.subr.mxu0 0.0
    %111 = vmatpush1.msra.mxu0 0.0
    %112 = vmatprep.subr.mxu0 0.0
    %113 = vmatpush1.msra.mxu0 0.0
    %114 = vmatprep.mubr.f32.mxu0 0.0
    %115 = vmatmul.mubr.f32.gmra.mrb[0].mxu0 %v48
    %v116 = vpop.f32.mrb[0].mxu0
    %v117 = vadd.f32 0.0, %v116
    %v118 = vpop.f32.mrb[0].mxu0
    %119 = vdwg.mxu0
    %vm120 = vcmask 523264
    %v121 = vsel %vm120, %v117, 0.0
    %v122 = vrot.slane %v121, 4
    %v123 = vadd.f32 %v121, %v122
    %v124 = vrot.slane %v123, 2
    %v125 = vadd.f32 %v123, %v124
    %v126 = vrot.slane %v125, 1
    %v127 = vadd.f32 %v125, %v126
    %v128 = vmul.f32 %v127, 0.125
    %v129 = vmul.f32 %v117, %v117
    %v130 = vsel %vm120, %v129, 0.0
    %v131 = vrot.slane %v130, 4
    %v132 = vadd.f32 %v130, %v131
    %v133 = vrot.slane %v132, 2
    %v134 = vadd.f32 %v132, %v133
    %v135 = vrot.slane %v134, 1
    %v136 = vadd.f32 %v134, %v135
    %v137 = vmul.f32 %v136, 0.125
    %v138 = vmul.f32 %v128, %v128
    %v139 = vsub.f32 %v137, %v138
    %v140 = vmax.f32 %v139, 0.0
    %v141 = vld [vmem:[%s2] sm:$0x3]
    %v142 = vadd.f32 %v140, 1e-05
    %v143 = vrsqrt.pop %v142
    %v144 = vmul.f32 %v141, %v143
    %v145 = vmul.f32 %v128, %v144
    %v147 = vrot.slane %v145, 7
    %v149 = vsub.f32 %v141, %v147
    %v150 = vlaneseq
    %v151 = vshrl.u32 %v150, 7
    %v152 = vsub.s32 0, %v151
    %v153 = vrot.slane %v144, %v152
    %v154 = vmul.f32 %v117, %v153
    %v155 = vlaneseq
    %v156 = vshrl.u32 %v155, 7
    %v157 = vsub.s32 1, %v156
    %v158 = vrot.slane %v149, %v157
    %v159 = vadd.f32 %v154, %v158
    %v160 = vmax.f32 %v159, 0.0
    %161 = vst.msk [vmem:[#allocation7] sm:$0xff] %vm120, %v160
    // Predicated region
    $region22: #{tpu_custom_call.1} parent=1 // pred_check
      _
    $region23: #{tpu_custom_call.1} parent=1 // pred_check_branch
      %163 = sbr.rel (0) target = $region25
    $region24: #{tpu_custom_call.1} parent=1 // pred_region
      %s165 = ssub.s32 128, 128
      %166 = vsyncadd [#allocation4], %s165
      %s168 = sshll.u32 [#allocation7], 4
      %s169 = int_to_ptr.vmem [resolvable:$true] %s168
      %171 = dma.vmem_to_hbm [thread:$0]  %s169, 128, %s3, [#allocation4]
    $region25: #{tpu_custom_call.1} parent=1 // pred_fallthru
      _
    // Predicated region
    $region26: #{tpu_custom_call.1} parent=1 // pred_check
      _
    $region27: #{tpu_custom_call.1} parent=1 // pred_check_branch
      %173 = sbr.rel (0) target = $region29
    $region28: #{tpu_custom_call.1} parent=1 // pred_region
      %174 = dma.done [#allocation4], 128
    $region29: #{tpu_custom_call.1} parent=1 // pred_fallthru
      _
    %175 = vsyncpa [#allocation3], 1
    %176 = vsyncpa [#allocation6], 1
    %177 = vsyncpa [#allocation4], 1

</llo_original>
